<compile_context>
chip_gen: v7x
topology: tpu7x:2x2x1
jax: 0.10.0
libtpu: 0.0.40
codegen_flags: <defaults>
</compile_context>

<pallas_src>
import functools

import jax
import jax.numpy as jnp
from jax.experimental import pallas as pl
from jax.experimental.pallas import tpu as pltpu

LANES = 128
TARGET_BLOCK_BYTES = 4 * 1024 * 1024  # ~4 MiB per input block (HBM-roofline plateau)
VMEM_LIMIT_BYTES = 32 << 20           # safe on v5e/v6e (128 MiB phys) and v7x (64 MiB)


def _pick_tile_rows(itemsize: int) -> int:
    """Rows per block so one input block is ~TARGET_BLOCK_BYTES in native dtype."""
    rows = TARGET_BLOCK_BYTES // (LANES * itemsize)
    rows = (rows // 16) * 16  # multiple of 16: f32 sublanes (8) and bf16 packing (16)
    return max(rows, 16)


def _mse_kernel(x_ref, y_ref, o_ref, *, tile_rows, total_rows, need_mask):
    # Cast in-vreg (inputs kept in native dtype in HBM to minimize bytes moved).
    x = x_ref[...].astype(jnp.float32)
    y = y_ref[...].astype(jnp.float32)
    d = x - y
    sq = d * d
    val = jnp.where(x > y, sq * jnp.float32(8.5), sq)

    if need_mask:
        # Last grid block may run past the valid row range; its buffer rows hold
        # garbage (possibly NaN). Use a SELECT mask (not val * mask) so NaN*0
        # cannot leak into the partial sum.  For non-last blocks the predicate is
        # trivially true and the select is free VPU filler.
        row_ids = jax.lax.broadcasted_iota(jnp.int32, val.shape, 0)
        global_row = pl.program_id(0) * tile_rows + row_ids
        val = jnp.where(global_row < total_rows, val, jnp.float32(0.0))

    # One lane-dense (1, 128) partial sum per grid step (reduce over rows only;
    # the single cross-lane reduction happens once, in the wrapper).
    o_ref[...] = jnp.sum(val, axis=0, keepdims=True)


def _elementwise_f32(x, y):
    """The per-element expression, in f32 (used for the tiny unaligned tail)."""
    xf = x.astype(jnp.float32)
    yf = y.astype(jnp.float32)
    d = xf - yf
    sq = d * d
    return jnp.where(xf > yf, sq * jnp.float32(8.5), sq)


def my_mse_loss_1(x, y):
    """Pallas implementation of My_MSE_loss_1.forward(x, y) -> scalar (f32)."""
    assert x.shape == y.shape, "x and y must have the same shape"
    n = x.size

    xf = jnp.ravel(x)
    yf = jnp.ravel(y)

    rows = n // LANES          # 128-aligned prefix handled by the kernel
    main_n = rows * LANES
    tail = n - main_n          # <=127 trailing elements handled in the wrapper

    total = jnp.float32(0.0)

    if rows > 0:
        x2 = xf[:main_n].reshape(rows, LANES)
        y2 = yf[:main_n].reshape(rows, LANES)

        max_tile_rows = _pick_tile_rows(x2.dtype.itemsize)

        if rows <= max_tile_rows:
            # Single block: block shape equals full array dims, no mask needed.
            tile_rows = rows
            num_blocks = 1
            need_mask = False
        else:
            tile_rows = max_tile_rows
            num_blocks = pl.cdiv(rows, tile_rows)
            need_mask = (rows % tile_rows) != 0

        kernel = functools.partial(
            _mse_kernel,
            tile_rows=tile_rows,
            total_rows=rows,
            need_mask=need_mask,
        )

        cost = pl.CostEstimate(
            flops=5 * main_n,  # sub, mul, mul-by-8.5, cmp, select (+row add) per elem
            transcendentals=0,
            bytes_accessed=(
                main_n * (x2.dtype.itemsize + y2.dtype.itemsize)
                + 4 * num_blocks * LANES
            ),
        )

        partials = pl.pallas_call(
            kernel,
            out_shape=jax.ShapeDtypeStruct((num_blocks, LANES), jnp.float32),
            grid_spec=pltpu.PrefetchScalarGridSpec(
                num_scalar_prefetch=0,
                grid=(num_blocks,),
                in_specs=[
                    pl.BlockSpec((tile_rows, LANES), lambda i: (i, 0)),
                    pl.BlockSpec((tile_rows, LANES), lambda i: (i, 0)),
                ],
                out_specs=pl.BlockSpec((1, LANES), lambda i: (i, 0)),
            ),
            compiler_params=pltpu.CompilerParams(
                # Each step owns its output block -> fully parallel grid axis
                # (lets Mosaic shard the loop across both TensorCores on v7x).
                # TODO(synk): if a v7x bundle dump shows plain "parallel" is not
                # split across TCs, key dimension_semantics on chip version and
                # use pltpu.CORE_PARALLEL there.
                dimension_semantics=("parallel",),
                vmem_limit_bytes=VMEM_LIMIT_BYTES,
            ),
            cost_estimate=cost,
        )(x2, y2)

        total = total + jnp.sum(partials, dtype=jnp.float32)

    if tail > 0:
        # Tiny (<128-element) unaligned tail: fold in with plain XLA instead of
        # materializing padded copies of both inputs in HBM.
        total = total + jnp.sum(
            _elementwise_f32(xf[main_n:], yf[main_n:]), dtype=jnp.float32
        )

    return total / jnp.float32(n)


def _reference(x, y):
    d = x.astype(jnp.float32) - y.astype(jnp.float32)
    sq = d * d
    return jnp.mean(jnp.where(x > y, sq * 8.5, sq))


if __name__ == "__main__":
    key = jax.random.PRNGKey(0)
    kx, ky = jax.random.split(key)
    x = jax.random.normal(kx, (2, 4, 16, 16), dtype=jnp.float32)
    y = jax.random.normal(ky, (2, 4, 16, 16), dtype=jnp.float32)

    out = my_mse_loss_1(x, y)
    jax.block_until_ready(out)

    ref = _reference(x, y)
    assert jnp.allclose(out, ref, rtol=1e-5, atol=1e-6), (out, ref)
    print("KERNEL_OK")
</pallas_src>

<mosaic_0001>
module attributes {stable_mosaic.version = 11 : i64} {
  func.func @_mse_kernel(%arg0: i32, %arg1: memref<16x128xf32, #tpu.memory_space<vmem>>, %arg2: memref<16x128xf32, #tpu.memory_space<vmem>>, %arg3: memref<1x128xf32, #tpu.memory_space<vmem>>) attributes {dimension_semantics = [#tpu.dimension_semantics<parallel>], iteration_bounds = array<i64: 1>, scalar_prefetch = 0 : i64, scratch_operands = 0 : i64, tpu.core_type = #tpu.core_type<tc>, window_params = [{transform_indices = @transform_0, window_bounds = array<i64: 16, 128>}, {transform_indices = @transform_1, window_bounds = array<i64: 16, 128>}, {transform_indices = @transform_2, window_bounds = array<i64: 1, 128>}]} {
    %c0 = arith.constant 0 : index
    %c0_0 = arith.constant 0 : index
    %0 = vector.load %arg1[%c0, %c0_0] : memref<16x128xf32, #tpu.memory_space<vmem>>, vector<16x128xf32>
    %c0_1 = arith.constant 0 : index
    %c0_2 = arith.constant 0 : index
    %1 = vector.load %arg2[%c0_1, %c0_2] : memref<16x128xf32, #tpu.memory_space<vmem>>, vector<16x128xf32>
    %2 = arith.subf %0, %1 : vector<16x128xf32>
    %3 = arith.mulf %2, %2 : vector<16x128xf32>
    %4 = arith.cmpf ogt, %0, %1 : vector<16x128xf32>
    %cst = arith.constant 8.500000e+00 : f32
    %5 = vector.broadcast %cst : f32 to vector<16x128xf32>
    %6 = arith.mulf %3, %5 : vector<16x128xf32>
    %7 = arith.select %4, %6, %3 : vector<16x128xi1>, vector<16x128xf32>
    %cst_3 = arith.constant dense<0.000000e+00> : vector<128xf32>
    %8 = vector.multi_reduction <add>, %7, %cst_3 [0] : vector<16x128xf32> to vector<128xf32>
    %9 = vector.shape_cast %8 : vector<128xf32> to vector<1x128xf32>
    %c0_4 = arith.constant 0 : index
    %c0_5 = arith.constant 0 : index
    %10 = vector.load %arg3[%c0_4, %c0_5] : memref<1x128xf32, #tpu.memory_space<vmem>>, vector<1x128xf32>
    tpu.vector_store %arg3[%c0_4, %c0_5], %9 {strides = array<i32>} : memref<1x128xf32, #tpu.memory_space<vmem>>, vector<1x128xf32>,
    return
  }
  func.func @transform_0(%arg0: i32) -> (i32, i32) {
    %c0_i32 = arith.constant 0 : i32
    %c0_i32_0 = arith.constant 0 : i32
    return %arg0, %c0_i32 : i32, i32
  }
  func.func @transform_1(%arg0: i32) -> (i32, i32) {
    %c0_i32 = arith.constant 0 : i32
    %c0_i32_0 = arith.constant 0 : i32
    return %arg0, %c0_i32 : i32, i32
  }
  func.func @transform_2(%arg0: i32) -> (i32, i32) {
    %c0_i32 = arith.constant 0 : i32
    %c0_i32_0 = arith.constant 0 : i32
    return %arg0, %c0_i32 : i32, i32
  }
}

</mosaic_0001>

<llo_original>
// kernel: tpu_custom_call.1
$region0: #{tpu_custom_call.1}
  #allocation0 [shape = 'u32[]', space=smem, size = 0x4, offset = 0x4, fixed_abs, tag = 'smem constant byte address 0x4 - core index']
  #allocation1 [shape = 'u32[144,128]{1,0:T(1,128)}', space=vmem, size = 0x12000, scoped, tag = 'internal scratch']
  %s0 = inlined_call_operand.hbm [shape: f32[16,128], index: 0, kind: input, shape index: {}]
  %s1 = inlined_call_operand.hbm [shape: f32[16,128], index: 1, kind: input, shape index: {}]
  %s2 = inlined_call_operand.hbm [shape: f32[1,128], index: 2, kind: output, shape index: {}]
  %s3 = sld [smem:[#allocation0]]
  $region26: #{tpu_custom_call.1} parent=0
    _
  %s5 = ssub.s32 1, %s3
  %s6 = scalar_select 0, %s5, %s3
  $region1: #{tpu_custom_call.1} parent=0
    #allocation2 [shape = 'u8[8192]{0}', space=vmem, size = 0x2000, scoped, tag = 'input window, operand 0, single buffered']
    #allocation3 [shape = 's32[1]{0}', space=sflag, size = 0x4, scoped, tag = 'scoped memory for tpu_custom_call.1']
    #allocation4 [shape = 's32[1]{0}', space=sflag, size = 0x4, scoped, tag = 'scoped memory for tpu_custom_call.1']
    #allocation5 [shape = 'u8[8192]{0}', space=vmem, size = 0x2000, scoped, tag = 'input window, operand 1, single buffered']
    #allocation6 [shape = 's32[1]{0}', space=sflag, size = 0x4, scoped, tag = 'scoped memory for tpu_custom_call.1']
    #allocation7 [shape = 'u8[512]{0}', space=vmem, size = 0x400, scoped, tag = 'output window, operand 0, single buffered']
    %7 = vsyncpa [#allocation3], 0
    %8 = vsyncpa [#allocation6], 0
    %9 = vsyncpa [#allocation4], 0
    // Predicated region
    $region2: #{tpu_custom_call.1} parent=1 // pred_check
      _
    $region3: #{tpu_custom_call.1} parent=1 // pred_check_branch
      %11 = sbr.rel (0) target = $region5
    $region4: #{tpu_custom_call.1} parent=1 // pred_region
      %s13 = ssub.s32 256, 256
      %14 = vsyncadd [#allocation3], %s13
      %s15 = sshll.u32 [#allocation2], 4
      %s16 = int_to_ptr.vmem [resolvable:$true] %s15
      %21 = dma.hbm_to_vmem [thread:$0]  %s0, 256, %s16, [#allocation3], 128, 128, 8
    $region5: #{tpu_custom_call.1} parent=1 // pred_fallthru
      _
    // Predicated region
    $region6: #{tpu_custom_call.1} parent=1 // pred_check
      _
    $region7: #{tpu_custom_call.1} parent=1 // pred_check_branch
      %23 = sbr.rel (0) target = $region9
    $region8: #{tpu_custom_call.1} parent=1 // pred_region
      %s25 = ssub.s32 256, 256
      %26 = vsyncadd [#allocation6], %s25
      %s27 = sshll.u32 [#allocation5], 4
      %s28 = int_to_ptr.vmem [resolvable:$true] %s27
      %33 = dma.hbm_to_vmem [thread:$0]  %s1, 256, %s28, [#allocation6], 128, 128, 8
    $region9: #{tpu_custom_call.1} parent=1 // pred_fallthru
      _
    // Predicated region
    $region10: #{tpu_custom_call.1} parent=1 // pred_check
      _
    $region11: #{tpu_custom_call.1} parent=1 // pred_check_branch
      %35 = sbr.rel (0) target = $region13
    $region12: #{tpu_custom_call.1} parent=1 // pred_region
      %36 = dma.done [#allocation3], 256
    $region13: #{tpu_custom_call.1} parent=1 // pred_fallthru
      _
    // Predicated region
    $region14: #{tpu_custom_call.1} parent=1 // pred_check
      _
    $region15: #{tpu_custom_call.1} parent=1 // pred_check_branch
      %38 = sbr.rel (0) target = $region17
    $region16: #{tpu_custom_call.1} parent=1 // pred_region
      %39 = dma.done [#allocation6], 256
    $region17: #{tpu_custom_call.1} parent=1 // pred_fallthru
      _
    %v40 = vld [vmem:[#allocation2] sm:$0xff]
    %v41 = vld [vmem:[#allocation2 + $0x8] sm:$0xff]
    %v42 = vld [vmem:[#allocation5] sm:$0xff]
    %v43 = vld [vmem:[#allocation5 + $0x8] sm:$0xff]
    %v44 = vsub.f32 %v40, %v42
    %v45 = vsub.f32 %v41, %v43
    %v46 = vmul.f32 %v44, %v44
    %v47 = vmul.f32 %v45, %v45
    %vm48 = vcmp.gt.f32.partialorder %v40, %v42
    %vm49 = vcmp.gt.f32.partialorder %v41, %v43
    %v50 = vmul.f32 %v46, 8.5
    %v51 = vmul.f32 %v47, 8.5
    %v52 = vsel %vm48, %v50, %v46
    %v53 = vsel %vm49, %v51, %v47
    %v54 = vadd.f32 %v52, %v53
    %v55 = vrot.slane %v54, 4
    %v56 = vadd.f32 %v54, %v55
    %v57 = vrot.slane %v56, 2
    %v58 = vadd.f32 %v56, %v57
    %v59 = vrot.slane %v58, 1
    %v60 = vadd.f32 %v58, %v59
    %61 = vst [vmem:[#allocation7] sm:$0x1] %v60
    // Predicated region
    $region18: #{tpu_custom_call.1} parent=1 // pred_check
      _
    $region19: #{tpu_custom_call.1} parent=1 // pred_check_branch
      %63 = sbr.rel (0) target = $region21
    $region20: #{tpu_custom_call.1} parent=1 // pred_region
      %s65 = ssub.s32 16, 16
      %66 = vsyncadd [#allocation4], %s65
      %s68 = sshll.u32 [#allocation7], 4
      %s69 = int_to_ptr.vmem [resolvable:$true] %s68
      %71 = dma.vmem_to_hbm [thread:$0]  %s69, 16, %s2, [#allocation4]
    $region21: #{tpu_custom_call.1} parent=1 // pred_fallthru
      _
    // Predicated region
    $region22: #{tpu_custom_call.1} parent=1 // pred_check
      _
    $region23: #{tpu_custom_call.1} parent=1 // pred_check_branch
      %73 = sbr.rel (0) target = $region25
    $region24: #{tpu_custom_call.1} parent=1 // pred_region
      %74 = dma.done [#allocation4], 16
    $region25: #{tpu_custom_call.1} parent=1 // pred_fallthru
      _
    %75 = vsyncpa [#allocation3], 1
    %76 = vsyncpa [#allocation6], 1
    %77 = vsyncpa [#allocation4], 1

</llo_original>
